<compile_context>
chip_gen: v7x
topology: tpu7x:2x2x1
jax: 0.10.0
libtpu: 0.0.40
codegen_flags: <defaults>
</compile_context>

<pallas_src>
import jax
import jax.numpy as jnp
from jax.experimental import pallas as pl
from jax.experimental.pallas import tpu as pltpu


_BLOCK_BYTES = 4 << 20   # ~4 MiB per block (per input/output buffer)
_VMEM_LIMIT = 32 << 20   # 2 bufs x (in + out) x 4 MiB = 16 MiB, + headroom


def _channel_enhance_kernel(coefs_ref, x_ref, o_ref):
    # coefs_ref: (3,) f32 in SMEM -> a, b, c
    a = coefs_ref[0]
    b = coefs_ref[1]
    c = coefs_ref[2]
    x = x_ref[...].astype(jnp.float32)
    # Horner: a*x^2 + b*x + c == (a*x + b)*x + c
    y = jnp.clip(x * ((a * x + b) * x + c), 0.0, 1.0)
    o_ref[...] = y.astype(o_ref.dtype)


def channel_enhance(img: jax.Array, enhance_coefs, *, donate_input: bool = False) -> jax.Array:
    """Matches ChannelEnhance.forward semantics.

    img: (b, c, h, w) or (c, h, w) float array.
    enhance_coefs: sequence of 3 scalars [a, b, c].
    donate_input: set True when `img` is donated by the caller (e.g. under
        jit with donate_argnums); aliases the input HBM buffer to the output.
    Returns (b, c, h, w) clamped to [0, 1] (leading batch dim added if 3-D).
    """
    coefs = jnp.asarray(
        [enhance_coefs[0], enhance_coefs[1], enhance_coefs[2]], dtype=jnp.float32)

    if img.ndim < 4:
        img = img[None, ...]  # 'c h w -> () c h w'
    B, C, H, W = img.shape
    dtype = img.dtype
    if not jnp.issubdtype(dtype, jnp.floating):
        raise TypeError(
            f"channel_enhance expects a floating-point image, got {dtype}; "
            "clamp(0,1) on integer dtypes would silently truncate.")

    itemsize = dtype.itemsize
    sub = max(8, 32 // itemsize)          # native sublane multiple: 8/16/32 for f32/bf16/int8
    total = B * C * H * W
    flat = img.reshape(-1)                # free (bitcast)

    # Pick the widest lane-dense view that divides the element count exactly
    # (no pad, no output slice). Fallback: pad to a 128 multiple (rare).
    lane = 0
    for cand in (1024, 512, 256, 128):
        if total % cand == 0:
            lane = cand
            break
    pad = 0
    if lane == 0:
        lane = 128
        pad = (-total) % lane
        flat = jnp.pad(flat, (0, pad))    # ragged fallback only (<128 elems of pad)
    rows = (total + pad) // lane
    x2d = flat.reshape(rows, lane)

    # Rows per block: target ~_BLOCK_BYTES per buffer (scales with dtype size),
    # rounded to the dtype's sublane multiple. Keep >= 2 grid steps for
    # mid-size inputs so both v7x TensorCores stream; tiny inputs get one
    # full-extent block.
    tr_target = max(sub, (_BLOCK_BYTES // (lane * itemsize)) // sub * sub)
    if rows < 2 * sub:
        tr = rows                                             # full-extent block
    else:
        half = ((rows + 1) // 2 + sub - 1) // sub * sub       # round_up(ceil(rows/2), sub)
        tr = min(tr_target, half)
    grid = (pl.cdiv(rows, tr),)           # last block may be partial (masked DMA)

    extra = {}
    if donate_input:
        extra["input_output_aliases"] = {1: 0}   # x2d -> out2d (same shape/dtype)

    out2d = pl.pallas_call(
        _channel_enhance_kernel,
        out_shape=jax.ShapeDtypeStruct((rows, lane), dtype),
        grid_spec=pl.GridSpec(
            grid=grid,
            in_specs=[
                # Coefficients live in SMEM as scalars (no retrace per coefs).
                pl.BlockSpec(memory_space=pltpu.MemorySpace.SMEM),
                pl.BlockSpec((tr, lane), lambda i: (i, 0)),
            ],
            out_specs=pl.BlockSpec((tr, lane), lambda i: (i, 0)),
        ),
        compiler_params=pltpu.CompilerParams(
            dimension_semantics=("parallel",),
            vmem_limit_bytes=_VMEM_LIMIT,
        ),
        cost_estimate=pl.CostEstimate(
            flops=6 * total,
            transcendentals=0,
            bytes_accessed=2 * total * itemsize,
        ),
        **extra,
    )(coefs, x2d)

    out = out2d.reshape(-1)
    if pad:
        out = out[:total]                 # only in the rare ragged fallback
    return out.reshape(B, C, H, W)


def _reference(img, enhance_coefs):
    a, b_coef, c_coef = enhance_coefs
    if img.ndim < 4:
        img = img[None, ...]
    coef = img ** 2 * a + img * b_coef + c_coef
    return jnp.clip(img * coef, 0.0, 1.0)


if __name__ == "__main__":
    key = jax.random.PRNGKey(0)
    enhance_coefs = [0.5, 0.8, 0.3]   # module __init__ argument

    # Primary test: small 4-D image batch (single block path).
    B, C, H, W = 2, 4, 16, 16
    img = jax.random.uniform(key, (B, C, H, W), dtype=jnp.float32)
    out = jax.block_until_ready(channel_enhance(img, enhance_coefs))
    ref = _reference(img, enhance_coefs)
    assert out.shape == (B, C, H, W)
    assert jnp.allclose(out, ref, atol=1e-6, rtol=1e-6)

    # Multi-block path with a partial boundary block (rows % tr != 0).
    k2 = jax.random.PRNGKey(1)
    img2 = jax.random.uniform(k2, (2, 3, 64, 96), dtype=jnp.float32)
    out2 = jax.block_until_ready(channel_enhance(img2, enhance_coefs))
    assert jnp.allclose(out2, _reference(img2, enhance_coefs), atol=1e-6, rtol=1e-6)

    # 3-D input gains a leading batch dim (c h w -> 1 c h w).
    img3 = jax.random.uniform(jax.random.PRNGKey(2), (4, 16, 16), dtype=jnp.float32)
    out3 = jax.block_until_ready(channel_enhance(img3, enhance_coefs))
    assert out3.shape == (1, 4, 16, 16)
    assert jnp.allclose(out3, _reference(img3, enhance_coefs), atol=1e-6, rtol=1e-6)

    # Ragged fallback path (element count not a multiple of 128).
    img4 = jax.random.uniform(jax.random.PRNGKey(3), (1, 3, 7, 11), dtype=jnp.float32)
    out4 = jax.block_until_ready(channel_enhance(img4, enhance_coefs))
    assert jnp.allclose(out4, _reference(img4, enhance_coefs), atol=1e-6, rtol=1e-6)

    # Input/output aliasing path (caller-donated buffers).
    out5 = jax.block_until_ready(channel_enhance(img, enhance_coefs, donate_input=True))
    assert jnp.allclose(out5, ref, atol=1e-6, rtol=1e-6)

    print("KERNEL_OK")
</pallas_src>

<mosaic_0001>
module attributes {stable_mosaic.version = 11 : i64} {
  func.func @_channel_enhance_kernel(%arg0: i32, %arg1: memref<3xf32, #tpu.memory_space<smem>>, %arg2: memref<2x1024xf32, #tpu.memory_space<vmem>>, %arg3: memref<2x1024xf32, #tpu.memory_space<vmem>>) attributes {dimension_semantics = [#tpu.dimension_semantics<parallel>], iteration_bounds = array<i64: 1>, scalar_prefetch = 0 : i64, scratch_operands = 0 : i64, tpu.core_type = #tpu.core_type<tc>, window_params = [{transform_indices = @transform_0, window_bounds = array<i64: 3>}, {transform_indices = @transform_1, window_bounds = array<i64: 2, 1024>}, {transform_indices = @transform_2, window_bounds = array<i64: 2, 1024>}]} {
    %c0 = arith.constant 0 : index
    %0 = memref.load %arg1[%c0] : memref<3xf32, #tpu.memory_space<smem>>
    %c1 = arith.constant 1 : index
    %1 = memref.load %arg1[%c1] : memref<3xf32, #tpu.memory_space<smem>>
    %c2 = arith.constant 2 : index
    %2 = memref.load %arg1[%c2] : memref<3xf32, #tpu.memory_space<smem>>
    %c0_0 = arith.constant 0 : index
    %c0_1 = arith.constant 0 : index
    %3 = vector.load %arg2[%c0_0, %c0_1] : memref<2x1024xf32, #tpu.memory_space<vmem>>, vector<2x1024xf32>
    %4 = vector.broadcast %0 : f32 to vector<2x1024xf32>
    %5 = arith.mulf %4, %3 : vector<2x1024xf32>
    %6 = vector.broadcast %1 : f32 to vector<2x1024xf32>
    %7 = arith.addf %5, %6 : vector<2x1024xf32>
    %8 = arith.mulf %7, %3 : vector<2x1024xf32>
    %9 = vector.broadcast %2 : f32 to vector<2x1024xf32>
    %10 = arith.addf %8, %9 : vector<2x1024xf32>
    %11 = arith.mulf %3, %10 : vector<2x1024xf32>
    %cst = arith.constant 0.000000e+00 : f32
    %cst_2 = arith.constant 1.000000e+00 : f32
    %12 = vector.broadcast %cst : f32 to vector<2x1024xf32>
    %13 = arith.maximumf %12, %11 : vector<2x1024xf32>
    %14 = vector.broadcast %cst_2 : f32 to vector<2x1024xf32>
    %15 = arith.minimumf %14, %13 : vector<2x1024xf32>
    %c0_3 = arith.constant 0 : index
    %c0_4 = arith.constant 0 : index
    %16 = vector.load %arg3[%c0_3, %c0_4] : memref<2x1024xf32, #tpu.memory_space<vmem>>, vector<2x1024xf32>
    tpu.vector_store %arg3[%c0_3, %c0_4], %15 {strides = array<i32>} : memref<2x1024xf32, #tpu.memory_space<vmem>>, vector<2x1024xf32>,
    return
  }
  func.func @transform_0(%arg0: i32) -> i32 {
    %c0_i32 = arith.constant 0 : i32
    %c0_i32_0 = arith.constant 0 : i32
    return %c0_i32 : i32
  }
  func.func @transform_1(%arg0: i32) -> (i32, i32) {
    %c0_i32 = arith.constant 0 : i32
    %c0_i32_0 = arith.constant 0 : i32
    return %arg0, %c0_i32 : i32, i32
  }
  func.func @transform_2(%arg0: i32) -> (i32, i32) {
    %c0_i32 = arith.constant 0 : i32
    %c0_i32_0 = arith.constant 0 : i32
    return %arg0, %c0_i32 : i32, i32
  }
}

</mosaic_0001>

<llo_original>
// kernel: tpu_custom_call.1
$region0: #{tpu_custom_call.1}
  #allocation0 [shape = 'u32[]', space=smem, size = 0x4, offset = 0x4, fixed_abs, tag = 'smem constant byte address 0x4 - core index']
  #allocation1 [shape = 'u32[144,128]{1,0:T(1,128)}', space=vmem, size = 0x12000, scoped, tag = 'internal scratch']
  %s0 = inlined_call_operand.hbm [shape: f32[3], index: 0, kind: input, shape index: {}]
  %s1 = inlined_call_operand.hbm [shape: f32[2,1024], index: 1, kind: input, shape index: {}]
  %s2 = inlined_call_operand.hbm [shape: f32[2,1024], index: 2, kind: output, shape index: {}]
  %s3 = sld [smem:[#allocation0]]
  $region26: #{tpu_custom_call.1} parent=0
    _
  %s5 = ssub.s32 1, %s3
  %s6 = scalar_select 0, %s5, %s3
  $region1: #{tpu_custom_call.1} parent=0
    #allocation2 [shape = 'u8[512]{0}', space=smem, size = 0x200, scoped, tag = 'input window, operand 0, single buffered']
    #allocation3 [shape = 's32[1]{0}', space=sflag, size = 0x4, scoped, tag = 'scoped memory for tpu_custom_call.1']
    #allocation4 [shape = 's32[1]{0}', space=sflag, size = 0x4, scoped, tag = 'scoped memory for tpu_custom_call.1']
    #allocation5 [shape = 's32[1]{0}', space=sflag, size = 0x4, scoped, tag = 'scoped memory for tpu_custom_call.1']
    #allocation6 [shape = 'u8[8192]{0}', space=vmem, size = 0x2000, scoped, tag = 'input window, operand 1, single buffered']
    #allocation7 [shape = 'u8[8192]{0}', space=vmem, size = 0x2000, scoped, tag = 'output window, operand 0, single buffered']
    %7 = vsyncpa [#allocation5], 0
    %8 = vsyncpa [#allocation3], 0
    %9 = vsyncpa [#allocation4], 0
    // Predicated region
    $region2: #{tpu_custom_call.1} parent=1 // pred_check
      _
    $region3: #{tpu_custom_call.1} parent=1 // pred_check_branch
      %11 = sbr.rel (0) target = $region5
    $region4: #{tpu_custom_call.1} parent=1 // pred_region
      %s13 = ssub.s32 16, 16
      %14 = vsyncadd [#allocation5], %s13
      %17 = dma.hbm_to_smem %s0, 16, [#allocation2], [#allocation5]
    $region5: #{tpu_custom_call.1} parent=1 // pred_fallthru
      _
    // Predicated region
    $region6: #{tpu_custom_call.1} parent=1 // pred_check
      _
    $region7: #{tpu_custom_call.1} parent=1 // pred_check_branch
      %19 = sbr.rel (0) target = $region9
    $region8: #{tpu_custom_call.1} parent=1 // pred_region
      %s21 = ssub.s32 256, 256
      %22 = vsyncadd [#allocation3], %s21
      %s24 = sshll.u32 [#allocation6], 4
      %s25 = int_to_ptr.vmem [resolvable:$true] %s24
      %27 = dma.hbm_to_vmem [thread:$0]  %s1, 256, %s25, [#allocation3]
    $region9: #{tpu_custom_call.1} parent=1 // pred_fallthru
      _
    // Predicated region
    $region10: #{tpu_custom_call.1} parent=1 // pred_check
      _
    $region11: #{tpu_custom_call.1} parent=1 // pred_check_branch
      %29 = sbr.rel (0) target = $region13
    $region12: #{tpu_custom_call.1} parent=1 // pred_region
      %30 = dma.done [#allocation5], 16
    $region13: #{tpu_custom_call.1} parent=1 // pred_fallthru
      _
    // Predicated region
    $region14: #{tpu_custom_call.1} parent=1 // pred_check
      _
    $region15: #{tpu_custom_call.1} parent=1 // pred_check_branch
      %32 = sbr.rel (0) target = $region17
    $region16: #{tpu_custom_call.1} parent=1 // pred_region
      %33 = dma.done [#allocation3], 256
    $region17: #{tpu_custom_call.1} parent=1 // pred_fallthru
      _
    %34 = sfence
    %s35 = sld [smem:[#allocation2]]
    %s36 = sld [smem:[#allocation2 + $0x1]]
    %s37 = sld [smem:[#allocation2 + $0x2]]
    %v38 = vld [vmem:[#allocation6] sm:$0xff]
    %v39 = vld [vmem:[#allocation6 + $0x8] sm:$0xff]
    %v40 = vstv %s35
    %v41 = vmul.f32 %v40, %v38
    %v42 = vmul.f32 %v40, %v39
    %v43 = vstv %s36
    %v44 = vadd.f32 %v41, %v43
    %v45 = vadd.f32 %v42, %v43
    %v46 = vmul.f32 %v44, %v38
    %v47 = vmul.f32 %v45, %v39
    %v48 = vstv %s37
    %v49 = vadd.f32 %v46, %v48
    %v50 = vadd.f32 %v47, %v48
    %v51 = vmul.f32 %v38, %v49
    %v52 = vmul.f32 %v39, %v50
    %v53 = vmax.f32 %v51, 0.0
    %v54 = vmax.f32 %v52, 0.0
    %v55 = vmin.f32 %v53, 1.0
    %v56 = vmin.f32 %v54, 1.0
    %57 = vst [vmem:[#allocation7] sm:$0xff] %v55
    %58 = vst [vmem:[#allocation7 + $0x8] sm:$0xff] %v56
    // Predicated region
    $region18: #{tpu_custom_call.1} parent=1 // pred_check
      _
    $region19: #{tpu_custom_call.1} parent=1 // pred_check_branch
      %60 = sbr.rel (0) target = $region21
    $region20: #{tpu_custom_call.1} parent=1 // pred_region
      %s62 = ssub.s32 256, 256
      %63 = vsyncadd [#allocation4], %s62
      %s65 = sshll.u32 [#allocation7], 4
      %s66 = int_to_ptr.vmem [resolvable:$true] %s65
      %68 = dma.vmem_to_hbm [thread:$0]  %s66, 256, %s2, [#allocation4]
    $region21: #{tpu_custom_call.1} parent=1 // pred_fallthru
      _
    // Predicated region
    $region22: #{tpu_custom_call.1} parent=1 // pred_check
      _
    $region23: #{tpu_custom_call.1} parent=1 // pred_check_branch
      %70 = sbr.rel (0) target = $region25
    $region24: #{tpu_custom_call.1} parent=1 // pred_region
      %71 = dma.done [#allocation4], 256
    $region25: #{tpu_custom_call.1} parent=1 // pred_fallthru
      _
    %72 = vsyncpa [#allocation3], 1
    %73 = vsyncpa [#allocation4], 1
    %74 = vsyncpa [#allocation5], 1

</llo_original>
